<compile_context>
chip_gen: v7x
topology: tpu7x:2x2x1
jax: 0.10.0
libtpu: 0.0.40
codegen_flags: <defaults>
</compile_context>

<pallas_src>
import math

import jax
import jax.numpy as jnp
from jax import lax
from jax.experimental import pallas as pl
from jax.experimental.pallas import tpu as pltpu


_INV_SQRT2 = 1.0 / math.sqrt(2.0)


def _gelu_exact(x):
    # PyTorch nn.GELU() default (approximate='none'): 0.5*x*(1+erf(x/sqrt(2)))
    return 0.5 * x * (1.0 + lax.erf(x * _INV_SQRT2))


def ffn_kernel(x_ref, w1_ref, w2_ref, o_ref, acc_ref):
    # One (d, f) grid step:
    #   x_ref  : (B, D)    full flattened activations (resident across the grid)
    #   w1_ref : (TF, D)   F-tile of W1 (native layout (FFN_size, D))
    #   w2_ref : (TN, TF)  (D-tile, F-tile) of W2 (native layout (D, FFN_size))
    #   o_ref  : (B, TN)   D-tile of the output
    #   acc_ref: (B, TN)   f32 accumulator over the F (reduction) axis
    f = pl.program_id(1)

    @pl.when(f == 0)
    def _():
        acc_ref[...] = jnp.zeros_like(acc_ref)

    # h = gelu(x @ W1_tile^T): contract over D (last dim of both) -> (B, TF).
    # Native dtypes go straight to the MXU; accumulate in f32.
    h = lax.dot_general(
        x_ref[...], w1_ref[...],
        dimension_numbers=(((1,), (1,)), ((), ())),
        preferred_element_type=jnp.float32)
    h = _gelu_exact(h)

    # acc += h @ W2_tile^T: contract over TF -> (B, TN).
    acc_ref[...] += lax.dot_general(
        h.astype(w2_ref.dtype), w2_ref[...],
        dimension_numbers=(((1,), (1,)), ((), ())),
        preferred_element_type=jnp.float32)

    @pl.when(f == pl.num_programs(1) - 1)
    def _():
        o_ref[...] = acc_ref[...].astype(o_ref.dtype)


def _pick_f_tile(F, D, w_bytes, budget_bytes):
    """Largest F-tile that is a multiple of 128 dividing F (or F itself) and keeps
    the double-buffered W1 tile (2*TF*D*w_bytes) under budget."""
    if 2 * F * D * w_bytes <= budget_bytes:
        return F
    cap = max(128, budget_bytes // (2 * D * w_bytes))
    t = (min(cap, F) // 128) * 128
    while t >= 128:
        if F % t == 0:
            return t
        t -= 128
    return F  # fallback: full F (legal block == full dim)


def _pick_d_tile(D, cap=2048):
    """Output-D tile: a multiple of 128 dividing D (or D itself), capped."""
    if D <= cap:
        return D
    t = (cap // 128) * 128
    while t >= 128:
        if D % t == 0:
            return t
        t -= 128
    return D


def ffn_forward(x, w1, w2, seq_len, d_model):
    """x: (B, seq_len, d_model); w1: (FFN_size, D); w2: (D, FFN_size).  Weights are
    consumed in their native PyTorch layouts (no transposes materialized)."""
    B = x.shape[0]
    D = seq_len * d_model
    F = w1.shape[0]
    assert w1.shape == (F, D) and w2.shape == (D, F)

    x_flat = x.reshape(B, D)  # glue: flatten(start_dim=1)

    x_bytes = jnp.dtype(x.dtype).itemsize
    w_bytes = jnp.dtype(w1.dtype).itemsize

    TF = _pick_f_tile(F, D, w_bytes, budget_bytes=24 * 2**20)
    TN = _pick_d_tile(D)
    n_f = F // TF
    n_d = D // TN

    # VMEM estimate: x + W1/W2 tiles (double-buffered) + out tile + f32 acc.
    vmem_need = (2 * B * D * x_bytes
                 + 2 * TF * D * w_bytes
                 + 2 * TN * TF * w_bytes
                 + 2 * B * TN * x_bytes
                 + B * TN * 4)
    vmem_limit = int(min(64 * 2**20, max(vmem_need + (4 << 20), 32 * 2**20)))

    cost = pl.CostEstimate(
        flops=4 * B * D * F,                       # two matmuls
        transcendentals=B * F * n_d,               # erf in exact GELU
        bytes_accessed=(2 * D * F * w_bytes        # W1 + W2
                        + 2 * B * D * x_bytes))    # x + out

    out_flat = pl.pallas_call(
        ffn_kernel,
        out_shape=jax.ShapeDtypeStruct((B, D), x.dtype),
        grid_spec=pltpu.PrefetchScalarGridSpec(
            num_scalar_prefetch=0,
            grid=(n_d, n_f),
            in_specs=[
                pl.BlockSpec((B, D), lambda d, f: (0, 0)),    # x: full, resident
                pl.BlockSpec((TF, D), lambda d, f: (f, 0)),   # W1 F-tile
                pl.BlockSpec((TN, TF), lambda d, f: (d, f)),  # W2 (D,F)-tile
            ],
            out_specs=pl.BlockSpec((B, TN), lambda d, f: (0, d)),
            scratch_shapes=[pltpu.VMEM((B, TN), jnp.float32)],
        ),
        compiler_params=pltpu.CompilerParams(
            dimension_semantics=("parallel", "arbitrary"),
            vmem_limit_bytes=vmem_limit),
        cost_estimate=cost,
    )(x_flat, w1, w2)

    return out_flat.reshape(B, seq_len, d_model)


def ffn_reference(x, w1, w2, seq_len, d_model):
    B = x.shape[0]
    x_flat = x.reshape(B, seq_len * d_model)
    h = x_flat @ w1.T
    h = 0.5 * h * (1.0 + lax.erf(h * _INV_SQRT2))
    y = h @ w2.T
    return y.reshape(B, seq_len, d_model)


if __name__ == "__main__":
    # Small shapes consistent with the module.
    B, seq_len, d_model, FFN_size = 2, 8, 32, 128
    D = seq_len * d_model

    key = jax.random.PRNGKey(0)
    kx, k1, k2 = jax.random.split(key, 3)

    x = jax.random.normal(kx, (B, seq_len, d_model), dtype=jnp.float32)

    # Deterministic init mimicking nn.Linear default U(-1/sqrt(fan_in), 1/sqrt(fan_in)).
    b1 = 1.0 / math.sqrt(D)
    b2 = 1.0 / math.sqrt(FFN_size)
    w1 = jax.random.uniform(k1, (FFN_size, D), jnp.float32, -b1, b1)   # W_1.weight
    w2 = jax.random.uniform(k2, (D, FFN_size), jnp.float32, -b2, b2)   # W_2.weight

    out = ffn_forward(x, w1, w2, seq_len, d_model)
    out = jax.block_until_ready(out)

    ref = ffn_reference(x, w1, w2, seq_len, d_model)
    assert out.shape == (B, seq_len, d_model)
    assert jnp.allclose(out, ref, atol=1e-4, rtol=1e-4), "mismatch vs reference"

    print("KERNEL_OK")
</pallas_src>

<mosaic_0001>
module attributes {stable_mosaic.version = 11 : i64} {
  func.func @ffn_kernel(%arg0: i32, %arg1: i32, %arg2: memref<2x256xf32, #tpu.memory_space<vmem>>, %arg3: memref<128x256xf32, #tpu.memory_space<vmem>>, %arg4: memref<256x128xf32, #tpu.memory_space<vmem>>, %arg5: memref<2x256xf32, #tpu.memory_space<vmem>>, %arg6: memref<2x256xf32, #tpu.memory_space<vmem>>) attributes {dimension_semantics = [#tpu.dimension_semantics<parallel>, #tpu.dimension_semantics<arbitrary>], iteration_bounds = array<i64: 1, 1>, scalar_prefetch = 0 : i64, scratch_operands = 1 : i64, tpu.core_type = #tpu.core_type<tc>, window_params = [{pipeline_mode = #tpu.pipeline_mode<synchronous>, transform_indices = @transform_0, window_bounds = array<i64: 2, 256>}, {transform_indices = @transform_1, window_bounds = array<i64: 128, 256>}, {transform_indices = @transform_2, window_bounds = array<i64: 256, 128>}, {transform_indices = @transform_3, window_bounds = array<i64: 2, 256>}]} {
    %c0_i32 = arith.constant 0 : i32
    %0 = arith.cmpi eq, %arg1, %c0_i32 : i32
    %1 = arith.extui %0 : i1 to i32
    %c0_i32_0 = arith.constant 0 : i32
    %2 = arith.cmpi ne, %1, %c0_i32_0 : i32
    scf.if %2 {
      %cst_16 = arith.constant 0.000000e+00 : f32
      %22 = vector.broadcast %cst_16 : f32 to vector<2x256xf32>
      %c0_17 = arith.constant 0 : index
      %c0_18 = arith.constant 0 : index
      %23 = vector.load %arg6[%c0_17, %c0_18] : memref<2x256xf32, #tpu.memory_space<vmem>>, vector<2x256xf32>
      tpu.vector_store %arg6[%c0_17, %c0_18], %22 {strides = array<i32>} : memref<2x256xf32, #tpu.memory_space<vmem>>, vector<2x256xf32>,
    } else {
    }
    %c0 = arith.constant 0 : index
    %c0_1 = arith.constant 0 : index
    %3 = vector.load %arg2[%c0, %c0_1] : memref<2x256xf32, #tpu.memory_space<vmem>>, vector<2x256xf32>
    %c0_2 = arith.constant 0 : index
    %c0_3 = arith.constant 0 : index
    %4 = vector.load %arg3[%c0_2, %c0_3] : memref<128x256xf32, #tpu.memory_space<vmem>>, vector<128x256xf32>
    %cst = arith.constant dense<0.000000e+00> : vector<2x128xf32>
    %5 = tpu.matmul %3, %4, %cst {dimension_numbers = #tpu.dot_dimension_numbers<[1], [1], [0], [0], [0, 0, 1, 0], [], []>} : vector<2x256xf32>, vector<128x256xf32>, vector<2x128xf32> -> vector<2x128xf32>
    %cst_4 = arith.constant 5.000000e-01 : f32
    %6 = vector.broadcast %cst_4 : f32 to vector<2x128xf32>
    %7 = arith.mulf %6, %5 : vector<2x128xf32>
    %cst_5 = arith.constant 0.707106769 : f32
    %8 = vector.broadcast %cst_5 : f32 to vector<2x128xf32>
    %9 = arith.mulf %5, %8 : vector<2x128xf32>
    %10 = math.erf %9 : vector<2x128xf32>
    %cst_6 = arith.constant 1.000000e+00 : f32
    %11 = vector.broadcast %cst_6 : f32 to vector<2x128xf32>
    %12 = arith.addf %11, %10 : vector<2x128xf32>
    %13 = arith.mulf %7, %12 : vector<2x128xf32>
    %c0_7 = arith.constant 0 : index
    %c0_8 = arith.constant 0 : index
    %14 = vector.load %arg6[%c0_7, %c0_8] : memref<2x256xf32, #tpu.memory_space<vmem>>, vector<2x256xf32>
    %c0_9 = arith.constant 0 : index
    %c0_10 = arith.constant 0 : index
    %15 = vector.load %arg4[%c0_9, %c0_10] : memref<256x128xf32, #tpu.memory_space<vmem>>, vector<256x128xf32>
    %cst_11 = arith.constant dense<0.000000e+00> : vector<2x256xf32>
    %16 = tpu.matmul %13, %15, %cst_11 {dimension_numbers = #tpu.dot_dimension_numbers<[1], [1], [0], [0], [0, 0, 1, 0], [], []>} : vector<2x128xf32>, vector<256x128xf32>, vector<2x256xf32> -> vector<2x256xf32>
    %17 = arith.addf %14, %16 : vector<2x256xf32>
    %c0_12 = arith.constant 0 : index
    %c0_13 = arith.constant 0 : index
    %18 = vector.load %arg6[%c0_12, %c0_13] : memref<2x256xf32, #tpu.memory_space<vmem>>, vector<2x256xf32>
    tpu.vector_store %arg6[%c0_12, %c0_13], %17 {strides = array<i32>} : memref<2x256xf32, #tpu.memory_space<vmem>>, vector<2x256xf32>,
    %c0_i32_14 = arith.constant 0 : i32
    %19 = arith.cmpi eq, %arg1, %c0_i32_14 : i32
    %20 = arith.extui %19 : i1 to i32
    %c0_i32_15 = arith.constant 0 : i32
    %21 = arith.cmpi ne, %20, %c0_i32_15 : i32
    scf.if %21 {
      %c0_16 = arith.constant 0 : index
      %c0_17 = arith.constant 0 : index
      %22 = vector.load %arg6[%c0_16, %c0_17] : memref<2x256xf32, #tpu.memory_space<vmem>>, vector<2x256xf32>
      %c0_18 = arith.constant 0 : index
      %c0_19 = arith.constant 0 : index
      %23 = vector.load %arg5[%c0_18, %c0_19] : memref<2x256xf32, #tpu.memory_space<vmem>>, vector<2x256xf32>
      tpu.vector_store %arg5[%c0_18, %c0_19], %22 {strides = array<i32>} : memref<2x256xf32, #tpu.memory_space<vmem>>, vector<2x256xf32>,
    } else {
    }
    return
  }
  func.func @transform_0(%arg0: i32, %arg1: i32) -> (i32, i32) {
    %c0_i32 = arith.constant 0 : i32
    %c0_i32_0 = arith.constant 0 : i32
    %c0_i32_1 = arith.constant 0 : i32
    return %c0_i32, %c0_i32_0 : i32, i32
  }
  func.func @transform_1(%arg0: i32, %arg1: i32) -> (i32, i32) {
    %c0_i32 = arith.constant 0 : i32
    %c0_i32_0 = arith.constant 0 : i32
    return %arg1, %c0_i32 : i32, i32
  }
  func.func @transform_2(%arg0: i32, %arg1: i32) -> (i32, i32) {
    %c0_i32 = arith.constant 0 : i32
    return %arg0, %arg1 : i32, i32
  }
  func.func @transform_3(%arg0: i32, %arg1: i32) -> (i32, i32) {
    %c0_i32 = arith.constant 0 : i32
    %c0_i32_0 = arith.constant 0 : i32
    return %c0_i32, %arg0 : i32, i32
  }
}

</mosaic_0001>

<llo_original>
// kernel: tpu_custom_call.1
$region0: #{tpu_custom_call.1}
  #allocation0 [shape = 'u32[]', space=smem, size = 0x4, offset = 0x4, fixed_abs, tag = 'smem constant byte address 0x4 - core index']
  #allocation1 [shape = 'u32[144,128]{1,0:T(1,128)}', space=vmem, size = 0x12000, scoped, tag = 'internal scratch']
  #allocation2 [shape = 'f32[2,256]{1,0:T(2,128)}', space=vmem, size = 0x800, scoped, tag = 'scratch operand']
  %s0 = inlined_call_operand.hbm [shape: f32[2,256], index: 0, kind: input, shape index: {}]
  %s1 = inlined_call_operand.hbm [shape: f32[128,256], index: 1, kind: input, shape index: {}]
  %s2 = inlined_call_operand.hbm [shape: f32[256,128], index: 2, kind: input, shape index: {}]
  %s3 = inlined_call_operand.hbm [shape: f32[2,256], index: 3, kind: output, shape index: {}]
  %s4 = sld [smem:[#allocation0]]
  $region42: #{tpu_custom_call.1} parent=0
    _
  %s6 = ssub.s32 1, %s4
  %s7 = scalar_select 0, %s6, %s4
  $region1: #{tpu_custom_call.1} parent=0
    #allocation3 [shape = 'u8[2048]{0}', space=vmem, size = 0x800, scoped, tag = 'input window, operand 0, single buffered']
    #allocation4 [shape = 's32[1]{0}', space=sflag, size = 0x4, scoped, tag = 'scoped memory for tpu_custom_call.1']
    #allocation5 [shape = 's32[1]{0}', space=sflag, size = 0x4, scoped, tag = 'scoped memory for tpu_custom_call.1']
    #allocation6 [shape = 'u8[131072]{0}', space=vmem, size = 0x20000, scoped, tag = 'input window, operand 1, single buffered']
    #allocation7 [shape = 's32[1]{0}', space=sflag, size = 0x4, scoped, tag = 'scoped memory for tpu_custom_call.1']
    #allocation8 [shape = 'u8[131072]{0}', space=vmem, size = 0x20000, scoped, tag = 'input window, operand 2, single buffered']
    #allocation9 [shape = 'u8[2048]{0}', space=vmem, size = 0x800, scoped, tag = 'output window, operand 0, single buffered']
    %8 = vsyncpa [#allocation4], 0
    %9 = vsyncpa [#allocation7], 0
    %10 = vsyncpa [#allocation5], 0
    // Predicated region
    $region2: #{tpu_custom_call.1} parent=1 // pred_check
      _
    $region3: #{tpu_custom_call.1} parent=1 // pred_check_branch
      %12 = sbr.rel (0) target = $region5
    $region4: #{tpu_custom_call.1} parent=1 // pred_region
      %s14 = ssub.s32 64, 64
      %15 = vsyncadd [#allocation4], %s14
      %s17 = sshll.u32 [#allocation3], 4
      %s18 = int_to_ptr.vmem [resolvable:$true] %s17
      %20 = dma.hbm_to_vmem [thread:$0]  %s0, 64, %s18, [#allocation4]
    $region5: #{tpu_custom_call.1} parent=1 // pred_fallthru
      _
    // Predicated region
    $region6: #{tpu_custom_call.1} parent=1 // pred_check
      _
    $region7: #{tpu_custom_call.1} parent=1 // pred_check_branch
      %22 = sbr.rel (0) target = $region9
    $region8: #{tpu_custom_call.1} parent=1 // pred_region
      %s24 = ssub.s32 4096, 4096
      %25 = vsyncadd [#allocation7], %s24
      %s26 = sshll.u32 [#allocation6], 4
      %s27 = int_to_ptr.vmem [resolvable:$true] %s26
      %32 = dma.hbm_to_vmem [thread:$0]  %s1, 4096, %s27, [#allocation7], 256, 256, 16
    $region9: #{tpu_custom_call.1} parent=1 // pred_fallthru
      _
    // Predicated region
    $region10: #{tpu_custom_call.1} parent=1 // pred_check
      _
    $region11: #{tpu_custom_call.1} parent=1 // pred_check_branch
      %34 = sbr.rel (0) target = $region13
    $region12: #{tpu_custom_call.1} parent=1 // pred_region
      %s36 = ssub.s32 4096, 4096
      %37 = vsyncadd [#allocation7], %s36
      %s38 = sshll.u32 [#allocation8], 4
      %s39 = int_to_ptr.vmem [resolvable:$true] %s38
      %44 = dma.hbm_to_vmem [thread:$0]  %s2, 4096, %s39, [#allocation7], 128, 128, 8
    $region13: #{tpu_custom_call.1} parent=1 // pred_fallthru
      _
    // Predicated region
    $region14: #{tpu_custom_call.1} parent=1 // pred_check
      _
    $region15: #{tpu_custom_call.1} parent=1 // pred_check_branch
      %46 = sbr.rel (0) target = $region17
    $region16: #{tpu_custom_call.1} parent=1 // pred_region
      %47 = dma.done [#allocation4], 64
    $region17: #{tpu_custom_call.1} parent=1 // pred_fallthru
      _
    // Predicated region
    $region18: #{tpu_custom_call.1} parent=1 // pred_check
      _
    $region19: #{tpu_custom_call.1} parent=1 // pred_check_branch
      %49 = sbr.rel (0) target = $region21
    $region20: #{tpu_custom_call.1} parent=1 // pred_region
      %50 = dma.done [#allocation7], 4096
    $region21: #{tpu_custom_call.1} parent=1 // pred_fallthru
      _
    // Predicated region
    $region22: #{tpu_custom_call.1} parent=1 // pred_check
      _
    $region23: #{tpu_custom_call.1} parent=1 // pred_check_branch
      %52 = sbr.rel (0) target = $region25
    $region24: #{tpu_custom_call.1} parent=1 // pred_region
      %53 = dma.done [#allocation7], 4096
    $region25: #{tpu_custom_call.1} parent=1 // pred_fallthru
      _
    %p54 = scmp.eq.s32.totalorder 0, 0
    // Predicated region
    $region26: #{tpu_custom_call.1} parent=1 // pred_check
      %p55 = pneg %p54
    $region27: #{tpu_custom_call.1} parent=1 // pred_check_branch
      %57 = sbr.rel (%p55) target = $region29
    $region28: #{tpu_custom_call.1} parent=1 // pred_region
      %58 = vst [vmem:[#allocation2] sm:$0xf] 0.0
    $region29: #{tpu_custom_call.1} parent=1 // pred_fallthru
      _
    %v59 = vld [vmem:[#allocation3] sm:$0xf]
    %v60 = vld [vmem:[#allocation6] sm:$0xff]
    %v61 = vld [vmem:[#allocation6 + $0x8] sm:$0xff]
    %v62 = vld [vmem:[#allocation6 + $0x10] sm:$0xff]
    %v63 = vld [vmem:[#allocation6 + $0x18] sm:$0xff]
    %v64 = vld [vmem:[#allocation6 + $0x20] sm:$0xff]
    %v65 = vld [vmem:[#allocation6 + $0x28] sm:$0xff]
    %v66 = vld [vmem:[#allocation6 + $0x30] sm:$0xff]
    %v67 = vld [vmem:[#allocation6 + $0x38] sm:$0xff]
    %v68 = vld [vmem:[#allocation6 + $0x40] sm:$0xff]
    %v69 = vld [vmem:[#allocation6 + $0x48] sm:$0xff]
    %v70 = vld [vmem:[#allocation6 + $0x50] sm:$0xff]
    %v71 = vld [vmem:[#allocation6 + $0x58] sm:$0xff]
    %v72 = vld [vmem:[#allocation6 + $0x60] sm:$0xff]
    %v73 = vld [vmem:[#allocation6 + $0x68] sm:$0xff]
    %v74 = vld [vmem:[#allocation6 + $0x70] sm:$0xff]
    %v75 = vld [vmem:[#allocation6 + $0x78] sm:$0xff]
    %v76 = vld [vmem:[#allocation6 + $0x80] sm:$0xff]
    %v77 = vld [vmem:[#allocation6 + $0x88] sm:$0xff]
    %v78 = vld [vmem:[#allocation6 + $0x90] sm:$0xff]
    %v79 = vld [vmem:[#allocation6 + $0x98] sm:$0xff]
    %v80 = vld [vmem:[#allocation6 + $0xa0] sm:$0xff]
    %v81 = vld [vmem:[#allocation6 + $0xa8] sm:$0xff]
    %v82 = vld [vmem:[#allocation6 + $0xb0] sm:$0xff]
    %v83 = vld [vmem:[#allocation6 + $0xb8] sm:$0xff]
    %v84 = vld [vmem:[#allocation6 + $0xc0] sm:$0xff]
    %v85 = vld [vmem:[#allocation6 + $0xc8] sm:$0xff]
    %v86 = vld [vmem:[#allocation6 + $0xd0] sm:$0xff]
    %v87 = vld [vmem:[#allocation6 + $0xd8] sm:$0xff]
    %v88 = vld [vmem:[#allocation6 + $0xe0] sm:$0xff]
    %v89 = vld [vmem:[#allocation6 + $0xe8] sm:$0xff]
    %v90 = vld [vmem:[#allocation6 + $0xf0] sm:$0xff]
    %v91 = vld [vmem:[#allocation6 + $0xf8] sm:$0xff]
    %v94 = vunpack.c.l.s4 1983009808
    %v95 = vunpack.c.0.s8 %v94
    %v96 = vlaneseq
    %v97 = vshrl.u32 %v96, 7
    %v98 = vsub.s32 %v95, %v97
    %v99 = vrot.slane %v59, %v98
    %v100 = vcombine.high %v99, %v99
    %103 = vmatprep.subr.mxu0 %v61
    %104 = vmatpush1.xpose.msra.mxu0 %v60
    %105 = vmatprep.subr.mxu0 %v63
    %106 = vmatpush1.xpose.msra.mxu0 %v62
    %107 = vmatprep.subr.mxu0 %v65
    %108 = vmatpush1.xpose.msra.mxu0 %v64
    %109 = vmatprep.subr.mxu0 %v67
    %110 = vmatpush1.xpose.msra.mxu0 %v66
    %111 = vmatprep.subr.mxu0 %v69
    %112 = vmatpush1.xpose.msra.mxu0 %v68
    %113 = vmatprep.subr.mxu0 %v71
    %114 = vmatpush1.xpose.msra.mxu0 %v70
    %115 = vmatprep.subr.mxu0 %v73
    %116 = vmatpush1.xpose.msra.mxu0 %v72
    %117 = vmatprep.subr.mxu0 %v75
    %118 = vmatpush1.xpose.msra.mxu0 %v74
    %119 = vmatprep.subr.mxu0 %v77
    %120 = vmatpush1.xpose.msra.mxu0 %v76
    %121 = vmatprep.subr.mxu0 %v79
    %122 = vmatpush1.xpose.msra.mxu0 %v78
    %123 = vmatprep.subr.mxu0 %v81
    %124 = vmatpush1.xpose.msra.mxu0 %v80
    %125 = vmatprep.subr.mxu0 %v83
    %126 = vmatpush1.xpose.msra.mxu0 %v82
    %127 = vmatprep.subr.mxu0 %v85
    %128 = vmatpush1.xpose.msra.mxu0 %v84
    %129 = vmatprep.subr.mxu0 %v87
    %130 = vmatpush1.xpose.msra.mxu0 %v86
    %131 = vmatprep.subr.mxu0 %v89
    %132 = vmatpush1.xpose.msra.mxu0 %v88
    %133 = vmatprep.subr.mxu0 %v91
    %134 = vmatpush1.xpose.msra.mxu0 %v90
    %135 = vmatprep.subr.mxu0 0.0
    %136 = vmatpush1.xpose.msra.mxu0 0.0
    %137 = vmatprep.subr.mxu0 0.0
    %138 = vmatpush1.xpose.msra.mxu0 0.0
    %139 = vmatprep.subr.mxu0 0.0
    %140 = vmatpush1.xpose.msra.mxu0 0.0
    %141 = vmatprep.subr.mxu0 0.0
    %142 = vmatpush1.xpose.msra.mxu0 0.0
    %143 = vmatprep.subr.mxu0 0.0
    %144 = vmatpush1.xpose.msra.mxu0 0.0
    %145 = vmatprep.subr.mxu0 0.0
    %146 = vmatpush1.xpose.msra.mxu0 0.0
    %147 = vmatprep.subr.mxu0 0.0
    %148 = vmatpush1.xpose.msra.mxu0 0.0
    %149 = vmatprep.subr.mxu0 0.0
    %150 = vmatpush1.xpose.msra.mxu0 0.0
    %151 = vmatprep.subr.mxu0 0.0
    %152 = vmatpush1.xpose.msra.mxu0 0.0
    %153 = vmatprep.subr.mxu0 0.0
    %154 = vmatpush1.xpose.msra.mxu0 0.0
    %155 = vmatprep.subr.mxu0 0.0
    %156 = vmatpush1.xpose.msra.mxu0 0.0
    %157 = vmatprep.subr.mxu0 0.0
    %158 = vmatpush1.xpose.msra.mxu0 0.0
    %159 = vmatprep.subr.mxu0 0.0
    %160 = vmatpush1.xpose.msra.mxu0 0.0
    %161 = vmatprep.subr.mxu0 0.0
    %162 = vmatpush1.xpose.msra.mxu0 0.0
    %163 = vmatprep.subr.mxu0 0.0
    %164 = vmatpush1.xpose.msra.mxu0 0.0
    %165 = vmatprep.subr.mxu0 0.0
    %166 = vmatpush1.xpose.msra.mxu0 0.0
    %167 = vmatprep.mubr.f32.mxu0 %v100
    %168 = vmatmul.mubr.f32.gmra.mrb[0].mxu0 %v99
    %v169 = vpop.f32.mrb[0].mxu0
    %v170 = vadd.f32 0.0, %v169
    %v171 = vpop.f32.mrb[0].mxu0
    %172 = vdwg.mxu0
    %v173 = vmul.f32 %v170, 0.5
    %v174 = vmul.f32 %v170, 0.70710677
    %v175 = verf.f32.pop %v174
    %v176 = vadd.f32 %v175, 1.0
    %v177 = vmul.f32 %v173, %v176
    %v178 = vld [vmem:[#allocation2] sm:$0xf]
    %v179 = vld [vmem:[#allocation8] sm:$0xff]
    %v180 = vld [vmem:[#allocation8 + $0x8] sm:$0xff]
    %v181 = vld [vmem:[#allocation8 + $0x10] sm:$0xff]
    %v182 = vld [vmem:[#allocation8 + $0x18] sm:$0xff]
    %v183 = vld [vmem:[#allocation8 + $0x20] sm:$0xff]
    %v184 = vld [vmem:[#allocation8 + $0x28] sm:$0xff]
    %v185 = vld [vmem:[#allocation8 + $0x30] sm:$0xff]
    %v186 = vld [vmem:[#allocation8 + $0x38] sm:$0xff]
    %v187 = vld [vmem:[#allocation8 + $0x40] sm:$0xff]
    %v188 = vld [vmem:[#allocation8 + $0x48] sm:$0xff]
    %v189 = vld [vmem:[#allocation8 + $0x50] sm:$0xff]
    %v190 = vld [vmem:[#allocation8 + $0x58] sm:$0xff]
    %v191 = vld [vmem:[#allocation8 + $0x60] sm:$0xff]
    %v192 = vld [vmem:[#allocation8 + $0x68] sm:$0xff]
    %v193 = vld [vmem:[#allocation8 + $0x70] sm:$0xff]
    %v194 = vld [vmem:[#allocation8 + $0x78] sm:$0xff]
    %v195 = vld [vmem:[#allocation8 + $0x80] sm:$0xff]
    %v196 = vld [vmem:[#allocation8 + $0x88] sm:$0xff]
    %v197 = vld [vmem:[#allocation8 + $0x90] sm:$0xff]
    %v198 = vld [vmem:[#allocation8 + $0x98] sm:$0xff]
    %v199 = vld [vmem:[#allocation8 + $0xa0] sm:$0xff]
    %v200 = vld [vmem:[#allocation8 + $0xa8] sm:$0xff]
    %v201 = vld [vmem:[#allocation8 + $0xb0] sm:$0xff]
    %v202 = vld [vmem:[#allocation8 + $0xb8] sm:$0xff]
    %v203 = vld [vmem:[#allocation8 + $0xc0] sm:$0xff]
    %v204 = vld [vmem:[#allocation8 + $0xc8] sm:$0xff]
    %v205 = vld [vmem:[#allocation8 + $0xd0] sm:$0xff]
    %v206 = vld [vmem:[#allocation8 + $0xd8] sm:$0xff]
    %v207 = vld [vmem:[#allocation8 + $0xe0] sm:$0xff]
    %v208 = vld [vmem:[#allocation8 + $0xe8] sm:$0xff]
    %v209 = vld [vmem:[#allocation8 + $0xf0] sm:$0xff]
    %v210 = vld [vmem:[#allocation8 + $0xf8] sm:$0xff]
    %211 = vmatprep.subr.mxu0 0.0
    %212 = vmatpush1.xpose.msra.mxu0 %v179
    %213 = vmatprep.subr.mxu0 0.0
    %214 = vmatpush1.xpose.msra.mxu0 %v180
    %215 = vmatprep.subr.mxu0 0.0
    %216 = vmatpush1.xpose.msra.mxu0 %v181
    %217 = vmatprep.subr.mxu0 0.0
    %218 = vmatpush1.xpose.msra.mxu0 %v182
    %219 = vmatprep.subr.mxu0 0.0
    %220 = vmatpush1.xpose.msra.mxu0 %v183
    %221 = vmatprep.subr.mxu0 0.0
    %222 = vmatpush1.xpose.msra.mxu0 %v184
    %223 = vmatprep.subr.mxu0 0.0
    %224 = vmatpush1.xpose.msra.mxu0 %v185
    %225 = vmatprep.subr.mxu0 0.0
    %226 = vmatpush1.xpose.msra.mxu0 %v186
    %227 = vmatprep.subr.mxu0 0.0
    %228 = vmatpush1.xpose.msra.mxu0 %v187
    %229 = vmatprep.subr.mxu0 0.0
    %230 = vmatpush1.xpose.msra.mxu0 %v188
    %231 = vmatprep.subr.mxu0 0.0
    %232 = vmatpush1.xpose.msra.mxu0 %v189
    %233 = vmatprep.subr.mxu0 0.0
    %234 = vmatpush1.xpose.msra.mxu0 %v190
    %235 = vmatprep.subr.mxu0 0.0
    %236 = vmatpush1.xpose.msra.mxu0 %v191
    %237 = vmatprep.subr.mxu0 0.0
    %238 = vmatpush1.xpose.msra.mxu0 %v192
    %239 = vmatprep.subr.mxu0 0.0
    %240 = vmatpush1.xpose.msra.mxu0 %v193
    %241 = vmatprep.subr.mxu0 0.0
    %242 = vmatpush1.xpose.msra.mxu0 %v194
    %243 = vmatprep.subr.mxu0 0.0
    %244 = vmatpush1.xpose.msra.mxu0 %v195
    %245 = vmatprep.subr.mxu0 0.0
    %246 = vmatpush1.xpose.msra.mxu0 %v196
    %247 = vmatprep.subr.mxu0 0.0
    %248 = vmatpush1.xpose.msra.mxu0 %v197
    %249 = vmatprep.subr.mxu0 0.0
    %250 = vmatpush1.xpose.msra.mxu0 %v198
    %251 = vmatprep.subr.mxu0 0.0
    %252 = vmatpush1.xpose.msra.mxu0 %v199
    %253 = vmatprep.subr.mxu0 0.0
    %254 = vmatpush1.xpose.msra.mxu0 %v200
    %255 = vmatprep.subr.mxu0 0.0
    %256 = vmatpush1.xpose.msra.mxu0 %v201
    %257 = vmatprep.subr.mxu0 0.0
    %258 = vmatpush1.xpose.msra.mxu0 %v202
    %259 = vmatprep.subr.mxu0 0.0
    %260 = vmatpush1.xpose.msra.mxu0 %v203
    %261 = vmatprep.subr.mxu0 0.0
    %262 = vmatpush1.xpose.msra.mxu0 %v204
    %263 = vmatprep.subr.mxu0 0.0
    %264 = vmatpush1.xpose.msra.mxu0 %v205
    %265 = vmatprep.subr.mxu0 0.0
    %266 = vmatpush1.xpose.msra.mxu0 %v206
    %267 = vmatprep.subr.mxu0 0.0
    %268 = vmatpush1.xpose.msra.mxu0 %v207
    %269 = vmatprep.subr.mxu0 0.0
    %270 = vmatpush1.xpose.msra.mxu0 %v208
    %271 = vmatprep.subr.mxu0 0.0
    %272 = vmatpush1.xpose.msra.mxu0 %v209
    %273 = vmatprep.subr.mxu0 0.0
    %274 = vmatpush1.xpose.msra.mxu0 %v210
    %275 = vmatprep.mubr.f32.mxu0 0.0
    %276 = vmatmul.mubr.f32.gmra.mrb[0].mxu0 %v177
    %v277 = vpop.f32.mrb[0].mxu0
    %v278 = vadd.f32 0.0, %v277
    %v279 = vpop.f32.mrb[0].mxu0
    %v280 = vadd.f32 0.0, %v279
    %281 = vdwg.mxu0
    %v284 = vcombine.low %v278, %v280
    %v286 = vunpack.c.l.s4 1983009808
    %v287 = vunpack.c.0.s8 %v286
    %v288 = vlaneseq
    %v289 = vshrl.u32 %v288, 7
    %v290 = vsub.s32 %v287, %v289
    %v291 = vrot.slane %v284, %v290
    %v293 = vadd.f32 %v178, %v291
    %294 = vst [vmem:[#allocation2] sm:$0xf] %v293
    // Predicated region
    $region30: #{tpu_custom_call.1} parent=1 // pred_check
      %p295 = pneg %p54
    $region31: #{tpu_custom_call.1} parent=1 // pred_check_branch
      %297 = sbr.rel (%p295) target = $region33
    $region32: #{tpu_custom_call.1} parent=1 // pred_region
      %v298 = vld [vmem:[#allocation2] sm:$0xf]
      %299 = vst [vmem:[#allocation9] sm:$0xf] %v298
    $region33: #{tpu_custom_call.1} parent=1 // pred_fallthru
      _
    // Predicated region
    $region34: #{tpu_custom_call.1} parent=1 // pred_check
      _
    $region35: #{tpu_custom_call.1} parent=1 // pred_check_branch
      %301 = sbr.rel (0) target = $region37
    $region36: #{tpu_custom_call.1} parent=1 // pred_region
      %s303 = ssub.s32 64, 64
      %304 = vsyncadd [#allocation5], %s303
      %s306 = sshll.u32 [#allocation9], 4
      %s307 = int_to_ptr.vmem [resolvable:$true] %s306
      %309 = dma.vmem_to_hbm [thread:$0]  %s307, 64, %s3, [#allocation5]
    $region37: #{tpu_custom_call.1} parent=1 // pred_fallthru
      _
    // Predicated region
    $region38: #{tpu_custom_call.1} parent=1 // pred_check
      _
    $region39: #{tpu_custom_call.1} parent=1 // pred_check_branch
      %311 = sbr.rel (0) target = $region41
    $region40: #{tpu_custom_call.1} parent=1 // pred_region
      %312 = dma.done [#allocation5], 64
    $region41: #{tpu_custom_call.1} parent=1 // pred_fallthru
      _
    %313 = vsyncpa [#allocation4], 1
    %314 = vsyncpa [#allocation7], 1
    %315 = vsyncpa [#allocation5], 1

</llo_original>
